<compile_context>
chip_gen: v7x
topology: tpu7x:2x2x1
jax: 0.10.0
libtpu: 0.0.40
codegen_flags: <defaults>
</compile_context>

<pallas_src>
import math

import jax
import jax.numpy as jnp
from jax import lax
from jax.experimental import pallas as pl
from jax.experimental.pallas import tpu as pltpu  # noqa: F401 (TPU backend import)

OUT_FEATURES = 100   # Linear(50, 100)
OUT_PAD = 128        # lane-dense padded output width (unmasked stores)


# ----------------------------------------------------------------------------
# Pallas kernel: whole-batch Q/K projection + PE, Q @ K^T, softmax, Linear
# ----------------------------------------------------------------------------
def _attn_kernel(text_ref, emb_ref, pe_ref,
                 wq_ref, bq_ref, wk_ref, bk_ref,
                 wl_ref, bl_ref, out_ref):
    # Single grid step: everything is resident in VMEM.
    pe = pe_ref[...]          # (B, H)   pe row per *batch* index
    wq = wq_ref[...]          # (H, H)
    wk = wk_ref[...]          # (H, H)
    bq = bq_ref[...]          # (1, H)
    bk = bk_ref[...]          # (1, H)
    wl = wl_ref[...]          # (S, OUT_PAD)  zero-padded Wlin^T
    bl = bl_ref[...]          # (1, OUT_PAD)  zero-padded bias

    B = text_ref.shape[0]
    # Static unroll over the (tiny) batch: all ops stay 2-D, no in-kernel
    # reshapes/relayouts, and there is no per-step grid/pipeline overhead.
    for b in range(B):
        x = text_ref[b]                       # (S, H)
        e = emb_ref[b]                        # (S, H)
        pe_b = pe[b:b + 1, :]                 # (1, H)

        # Fused bias + positional-encoding broadcast terms.
        q_add = bq + pe_b                     # (1, H)
        k_add = bk + pe_b                     # (1, H)

        # Q = Wq(text) + pe[b] ; K = Wk(emb) + pe[b]  (dropout = identity, eval)
        q = jnp.dot(x, wq, preferred_element_type=jnp.float32) + q_add
        k = jnp.dot(e, wk, preferred_element_type=jnp.float32) + k_add

        # weight_score = Q @ K^T : contract on H directly (no materialized k.T)
        s = lax.dot_general(q, k, (((1,), (1,)), ((), ())),
                            preferred_element_type=jnp.float32)   # (S, S)

        # softmax over last dim (exact reciprocal keeps downstream labels stable)
        s = s - jnp.max(s, axis=-1, keepdims=True)
        p = jnp.exp(s)
        p = p * pl.reciprocal(jnp.sum(p, axis=-1, keepdims=True), approx=False)

        # Linear(50, 100), padded to 128 output lanes -> (S, OUT_PAD)
        out = jnp.dot(p, wl, preferred_element_type=jnp.float32) + bl
        out_ref[b] = out.astype(out_ref.dtype)


def self_attention_scores(text_embedding, embedding, pe_rows,
                          wq_t, bq, wk_t, bk, wlin_t_pad, blin_pad):
    """Returns the (B, 50, 100) tensor that PyTorch feeds into kmeans."""
    B, S, _ = text_embedding.shape
    out_padded = pl.pallas_call(
        _attn_kernel,
        out_shape=jax.ShapeDtypeStruct((B, S, OUT_PAD), jnp.float32),
    )(text_embedding, embedding, pe_rows,
      wq_t, bq, wk_t, bk, wlin_t_pad, blin_pad)
    return out_padded[:, :, :OUT_FEATURES]


# ----------------------------------------------------------------------------
# Deterministic 2-means assignment (stand-in for sklearn KMeans.fit_predict)
# ----------------------------------------------------------------------------
def _two_means_labels(points, n_iter=10):
    # TODO(synk): sklearn KMeans.fit_predict (joblib checkpoint) cannot be
    # reproduced bit-exactly; deterministic Lloyd iteration, labels are
    # permutation-ambiguous by construction.
    c0 = jnp.min(points, axis=0)
    c1 = jnp.max(points, axis=0)
    centers = jnp.stack([c0, c1], axis=0)  # (2, 2)

    def step(_, centers):
        d = jnp.sum((points[:, None, :] - centers[None, :, :]) ** 2, axis=-1)
        labels = jnp.argmin(d, axis=-1)
        onehot = jax.nn.one_hot(labels, 2, dtype=points.dtype)       # (N, 2)
        counts = jnp.maximum(onehot.sum(axis=0), 1.0)[:, None]        # (2, 1)
        new_centers = (onehot.T @ points) / counts
        return new_centers

    centers = jax.lax.fori_loop(0, n_iter, step, centers)
    d = jnp.sum((points[:, None, :] - centers[None, :, :]) ** 2, axis=-1)
    return jnp.argmin(d, axis=-1)


# ----------------------------------------------------------------------------
# Parameter / buffer construction
# ----------------------------------------------------------------------------
def make_params(key, hidden):
    ks = jax.random.split(key, 6)
    bound_h = 1.0 / math.sqrt(hidden)
    bound_l = 1.0 / math.sqrt(50.0)
    wq = jax.random.uniform(ks[0], (hidden, hidden), jnp.float32, -bound_h, bound_h)
    bq = jax.random.uniform(ks[1], (hidden,), jnp.float32, -bound_h, bound_h)
    wk = jax.random.uniform(ks[2], (hidden, hidden), jnp.float32, -bound_h, bound_h)
    bk = jax.random.uniform(ks[3], (hidden,), jnp.float32, -bound_h, bound_h)
    wlin = jax.random.uniform(ks[4], (100, 50), jnp.float32, -bound_l, bound_l)
    blin = jax.random.uniform(ks[5], (100,), jnp.float32, -bound_l, bound_l)
    return wq, bq, wk, bk, wlin, blin


def make_positional_encoding(max_len, d_model):
    position = jnp.arange(max_len, dtype=jnp.float32)[:, None]
    div_term = jnp.exp(jnp.arange(0, d_model, 2, dtype=jnp.float32)
                       * (-math.log(10000.0) / d_model))
    ang = position * div_term                       # (max_len, d_model/2)
    pe = jnp.zeros((max_len, d_model), jnp.float32)
    pe = pe.at[:, 0::2].set(jnp.sin(ang))
    pe = pe.at[:, 1::2].set(jnp.cos(ang))
    return pe


def self_attention_a_forward(text_embedding, embedding, params, pe_full):
    wq, bq, wk, bk, wlin, blin = params
    B, S, H = text_embedding.shape
    pe_rows = pe_full[:B]                            # pe[:b] -> one row per batch idx

    # Zero-pad the 100-wide Linear to 128 output lanes (unmasked stores in-kernel).
    wlin_t_pad = jnp.zeros((S, OUT_PAD), jnp.float32).at[:, :OUT_FEATURES].set(wlin.T)
    blin_pad = jnp.zeros((1, OUT_PAD), jnp.float32).at[:, :OUT_FEATURES].set(blin)

    weight_prob = self_attention_scores(
        text_embedding, embedding, pe_rows,
        wq.T, bq.reshape(1, H),
        wk.T, bk.reshape(1, H),
        wlin_t_pad, blin_pad)

    points = weight_prob.reshape(-1, 2)              # (B*50*50, 2)
    labels = _two_means_labels(points)
    adj_matrix = labels.reshape(B, 50, 50).astype(jnp.float32)
    return adj_matrix


# ----------------------------------------------------------------------------
if __name__ == "__main__":
    B, S, H = 2, 50, 32          # S must be 50 (Linear(50, 100) + 50x50 adjacency)
    key = jax.random.PRNGKey(0)
    k_text, k_emb, k_par = jax.random.split(key, 3)

    text_embedding = jax.random.normal(k_text, (B, S, H), jnp.float32)
    embedding = jax.random.normal(k_emb, (B, S, H), jnp.float32)

    params = make_params(k_par, H)
    pe_full = make_positional_encoding(max_len=64, d_model=H)

    adj = self_attention_a_forward(text_embedding, embedding, params, pe_full)
    adj = jax.block_until_ready(adj)

    assert adj.shape == (B, 50, 50), adj.shape
    assert adj.dtype == jnp.float32
    print("KERNEL_OK")
</pallas_src>

<mosaic_0001>
module attributes {stable_mosaic.version = 11 : i64} {
  func.func @_attn_kernel(%arg0: memref<2x50x32xf32, #tpu.memory_space<vmem>>, %arg1: memref<2x50x32xf32, #tpu.memory_space<vmem>>, %arg2: memref<2x32xf32, #tpu.memory_space<vmem>>, %arg3: memref<32x32xf32, #tpu.memory_space<vmem>>, %arg4: memref<1x32xf32, #tpu.memory_space<vmem>>, %arg5: memref<32x32xf32, #tpu.memory_space<vmem>>, %arg6: memref<1x32xf32, #tpu.memory_space<vmem>>, %arg7: memref<50x128xf32, #tpu.memory_space<vmem>>, %arg8: memref<1x128xf32, #tpu.memory_space<vmem>>, %arg9: memref<2x50x128xf32, #tpu.memory_space<vmem>>) attributes {dimension_semantics = [], scalar_prefetch = 0 : i64, scratch_operands = 0 : i64, tpu.core_type = #tpu.core_type<tc>} {
    %c0 = arith.constant 0 : index
    %c0_0 = arith.constant 0 : index
    %0 = vector.load %arg2[%c0, %c0_0] : memref<2x32xf32, #tpu.memory_space<vmem>>, vector<2x32xf32>
    %c0_1 = arith.constant 0 : index
    %c0_2 = arith.constant 0 : index
    %1 = vector.load %arg3[%c0_1, %c0_2] : memref<32x32xf32, #tpu.memory_space<vmem>>, vector<32x32xf32>
    %c0_3 = arith.constant 0 : index
    %c0_4 = arith.constant 0 : index
    %2 = vector.load %arg5[%c0_3, %c0_4] : memref<32x32xf32, #tpu.memory_space<vmem>>, vector<32x32xf32>
    %c0_5 = arith.constant 0 : index
    %c0_6 = arith.constant 0 : index
    %3 = vector.load %arg4[%c0_5, %c0_6] : memref<1x32xf32, #tpu.memory_space<vmem>>, vector<1x32xf32>
    %c0_7 = arith.constant 0 : index
    %c0_8 = arith.constant 0 : index
    %4 = vector.load %arg6[%c0_7, %c0_8] : memref<1x32xf32, #tpu.memory_space<vmem>>, vector<1x32xf32>
    %c0_9 = arith.constant 0 : index
    %c0_10 = arith.constant 0 : index
    %5 = vector.load %arg7[%c0_9, %c0_10] : memref<50x128xf32, #tpu.memory_space<vmem>>, vector<50x128xf32>
    %c0_11 = arith.constant 0 : index
    %c0_12 = arith.constant 0 : index
    %6 = vector.load %arg8[%c0_11, %c0_12] : memref<1x128xf32, #tpu.memory_space<vmem>>, vector<1x128xf32>
    %c0_13 = arith.constant 0 : index
    %c0_14 = arith.constant 0 : index
    %c0_15 = arith.constant 0 : index
    %7 = vector.load %arg0[%c0_13, %c0_14, %c0_15] : memref<2x50x32xf32, #tpu.memory_space<vmem>>, vector<1x50x32xf32>
    %8 = vector.shape_cast %7 : vector<1x50x32xf32> to vector<50x32xf32>
    %c0_16 = arith.constant 0 : index
    %c0_17 = arith.constant 0 : index
    %c0_18 = arith.constant 0 : index
    %9 = vector.load %arg1[%c0_16, %c0_17, %c0_18] : memref<2x50x32xf32, #tpu.memory_space<vmem>>, vector<1x50x32xf32>
    %10 = vector.shape_cast %9 : vector<1x50x32xf32> to vector<50x32xf32>
    %11 = vector.extract_strided_slice %0 {offsets = [0, 0], sizes = [1, 32], strides = [1, 1]} : vector<2x32xf32> to vector<1x32xf32>
    %12 = arith.addf %3, %11 : vector<1x32xf32>
    %13 = arith.addf %4, %11 : vector<1x32xf32>
    %cst = arith.constant dense<0.000000e+00> : vector<50x32xf32>
    %14 = tpu.matmul %8, %1, %cst {dimension_numbers = #tpu.dot_dimension_numbers<[1], [0], [0], [1], [0, 0, 1, 1], [], []>} : vector<50x32xf32>, vector<32x32xf32>, vector<50x32xf32> -> vector<50x32xf32>
    %15 = vector.broadcast %12 : vector<1x32xf32> to vector<50x32xf32>
    %16 = arith.addf %14, %15 : vector<50x32xf32>
    %cst_19 = arith.constant dense<0.000000e+00> : vector<50x32xf32>
    %17 = tpu.matmul %10, %2, %cst_19 {dimension_numbers = #tpu.dot_dimension_numbers<[1], [0], [0], [1], [0, 0, 1, 1], [], []>} : vector<50x32xf32>, vector<32x32xf32>, vector<50x32xf32> -> vector<50x32xf32>
    %18 = vector.broadcast %13 : vector<1x32xf32> to vector<50x32xf32>
    %19 = arith.addf %17, %18 : vector<50x32xf32>
    %cst_20 = arith.constant dense<0.000000e+00> : vector<50x50xf32>
    %20 = tpu.matmul %16, %19, %cst_20 {dimension_numbers = #tpu.dot_dimension_numbers<[1], [1], [0], [0], [0, 0, 1, 0], [], []>} : vector<50x32xf32>, vector<50x32xf32>, vector<50x50xf32> -> vector<50x50xf32>
    %cst_21 = arith.constant dense<0xFF800000> : vector<50xf32>
    %21 = vector.multi_reduction <maximumf>, %20, %cst_21 [1] : vector<50x50xf32> to vector<50xf32>
    %22 = vector.shape_cast %21 : vector<50xf32> to vector<50x1xf32>
    %23 = vector.broadcast %22 : vector<50x1xf32> to vector<50x50xf32>
    %24 = arith.subf %20, %23 : vector<50x50xf32>
    %25 = math.exp %24 : vector<50x50xf32>
    %cst_22 = arith.constant dense<0.000000e+00> : vector<50xf32>
    %26 = vector.multi_reduction <add>, %25, %cst_22 [1] : vector<50x50xf32> to vector<50xf32>
    %27 = vector.shape_cast %26 : vector<50xf32> to vector<50x1xf32>
    %28 = tpu.reciprocal %27 : vector<50x1xf32> -> vector<50x1xf32>
    %29 = vector.broadcast %28 : vector<50x1xf32> to vector<50x50xf32>
    %30 = arith.mulf %25, %29 : vector<50x50xf32>
    %cst_23 = arith.constant dense<0.000000e+00> : vector<50x128xf32>
    %31 = tpu.matmul %30, %5, %cst_23 {dimension_numbers = #tpu.dot_dimension_numbers<[1], [0], [0], [1], [0, 0, 1, 1], [], []>} : vector<50x50xf32>, vector<50x128xf32>, vector<50x128xf32> -> vector<50x128xf32>
    %32 = vector.broadcast %6 : vector<1x128xf32> to vector<50x128xf32>
    %33 = arith.addf %31, %32 : vector<50x128xf32>
    %c0_24 = arith.constant 0 : index
    %c0_25 = arith.constant 0 : index
    %c0_26 = arith.constant 0 : index
    %34 = vector.load %arg9[%c0_24, %c0_25, %c0_26] : memref<2x50x128xf32, #tpu.memory_space<vmem>>, vector<1x50x128xf32>
    %35 = vector.shape_cast %34 : vector<1x50x128xf32> to vector<50x128xf32>
    %36 = vector.shape_cast %33 : vector<50x128xf32> to vector<1x50x128xf32>
    tpu.vector_store %arg9[%c0_24, %c0_25, %c0_26], %36 {strides = array<i32>} : memref<2x50x128xf32, #tpu.memory_space<vmem>>, vector<1x50x128xf32>,
    %c1 = arith.constant 1 : index
    %c0_27 = arith.constant 0 : index
    %c0_28 = arith.constant 0 : index
    %37 = vector.load %arg0[%c1, %c0_27, %c0_28] : memref<2x50x32xf32, #tpu.memory_space<vmem>>, vector<1x50x32xf32>
    %38 = vector.shape_cast %37 : vector<1x50x32xf32> to vector<50x32xf32>
    %c1_29 = arith.constant 1 : index
    %c0_30 = arith.constant 0 : index
    %c0_31 = arith.constant 0 : index
    %39 = vector.load %arg1[%c1_29, %c0_30, %c0_31] : memref<2x50x32xf32, #tpu.memory_space<vmem>>, vector<1x50x32xf32>
    %40 = vector.shape_cast %39 : vector<1x50x32xf32> to vector<50x32xf32>
    %41 = vector.extract_strided_slice %0 {offsets = [1, 0], sizes = [1, 32], strides = [1, 1]} : vector<2x32xf32> to vector<1x32xf32>
    %42 = arith.addf %3, %41 : vector<1x32xf32>
    %43 = arith.addf %4, %41 : vector<1x32xf32>
    %cst_32 = arith.constant dense<0.000000e+00> : vector<50x32xf32>
    %44 = tpu.matmul %38, %1, %cst_32 {dimension_numbers = #tpu.dot_dimension_numbers<[1], [0], [0], [1], [0, 0, 1, 1], [], []>} : vector<50x32xf32>, vector<32x32xf32>, vector<50x32xf32> -> vector<50x32xf32>
    %45 = vector.broadcast %42 : vector<1x32xf32> to vector<50x32xf32>
    %46 = arith.addf %44, %45 : vector<50x32xf32>
    %cst_33 = arith.constant dense<0.000000e+00> : vector<50x32xf32>
    %47 = tpu.matmul %40, %2, %cst_33 {dimension_numbers = #tpu.dot_dimension_numbers<[1], [0], [0], [1], [0, 0, 1, 1], [], []>} : vector<50x32xf32>, vector<32x32xf32>, vector<50x32xf32> -> vector<50x32xf32>
    %48 = vector.broadcast %43 : vector<1x32xf32> to vector<50x32xf32>
    %49 = arith.addf %47, %48 : vector<50x32xf32>
    %cst_34 = arith.constant dense<0.000000e+00> : vector<50x50xf32>
    %50 = tpu.matmul %46, %49, %cst_34 {dimension_numbers = #tpu.dot_dimension_numbers<[1], [1], [0], [0], [0, 0, 1, 0], [], []>} : vector<50x32xf32>, vector<50x32xf32>, vector<50x50xf32> -> vector<50x50xf32>
    %cst_35 = arith.constant dense<0xFF800000> : vector<50xf32>
    %51 = vector.multi_reduction <maximumf>, %50, %cst_35 [1] : vector<50x50xf32> to vector<50xf32>
    %52 = vector.shape_cast %51 : vector<50xf32> to vector<50x1xf32>
    %53 = vector.broadcast %52 : vector<50x1xf32> to vector<50x50xf32>
    %54 = arith.subf %50, %53 : vector<50x50xf32>
    %55 = math.exp %54 : vector<50x50xf32>
    %cst_36 = arith.constant dense<0.000000e+00> : vector<50xf32>
    %56 = vector.multi_reduction <add>, %55, %cst_36 [1] : vector<50x50xf32> to vector<50xf32>
    %57 = vector.shape_cast %56 : vector<50xf32> to vector<50x1xf32>
    %58 = tpu.reciprocal %57 : vector<50x1xf32> -> vector<50x1xf32>
    %59 = vector.broadcast %58 : vector<50x1xf32> to vector<50x50xf32>
    %60 = arith.mulf %55, %59 : vector<50x50xf32>
    %cst_37 = arith.constant dense<0.000000e+00> : vector<50x128xf32>
    %61 = tpu.matmul %60, %5, %cst_37 {dimension_numbers = #tpu.dot_dimension_numbers<[1], [0], [0], [1], [0, 0, 1, 1], [], []>} : vector<50x50xf32>, vector<50x128xf32>, vector<50x128xf32> -> vector<50x128xf32>
    %62 = vector.broadcast %6 : vector<1x128xf32> to vector<50x128xf32>
    %63 = arith.addf %61, %62 : vector<50x128xf32>
    %c1_38 = arith.constant 1 : index
    %c0_39 = arith.constant 0 : index
    %c0_40 = arith.constant 0 : index
    %64 = vector.load %arg9[%c1_38, %c0_39, %c0_40] : memref<2x50x128xf32, #tpu.memory_space<vmem>>, vector<1x50x128xf32>
    %65 = vector.shape_cast %64 : vector<1x50x128xf32> to vector<50x128xf32>
    %66 = vector.shape_cast %63 : vector<50x128xf32> to vector<1x50x128xf32>
    tpu.vector_store %arg9[%c1_38, %c0_39, %c0_40], %66 {strides = array<i32>} : memref<2x50x128xf32, #tpu.memory_space<vmem>>, vector<1x50x128xf32>,
    return
  }
}

</mosaic_0001>

<llo_original>
// kernel: tpu_custom_call.1
$region0: #{tpu_custom_call.1}
  #allocation0 [shape = 'u32[]', space=smem, size = 0x4, offset = 0x4, fixed_abs, tag = 'smem constant byte address 0x4 - core index']
  #allocation1 [shape = 'u32[144,128]{1,0:T(1,128)}', space=vmem, size = 0x12000, scoped, tag = 'internal scratch']
  %s0 = inlined_call_operand.vmem [shape: f32[2,50,32], index: 0, kind: input, shape index: {}]
  %s1 = inlined_call_operand.vmem [shape: f32[2,50,32], index: 1, kind: input, shape index: {}]
  %s2 = inlined_call_operand.vmem [shape: f32[2,32], index: 2, kind: input, shape index: {}]
  %s3 = inlined_call_operand.vmem [shape: f32[32,32], index: 3, kind: input, shape index: {}]
  %s4 = inlined_call_operand.vmem [shape: f32[1,32], index: 4, kind: input, shape index: {}]
  %s5 = inlined_call_operand.vmem [shape: f32[32,32], index: 5, kind: input, shape index: {}]
  %s6 = inlined_call_operand.vmem [shape: f32[1,32], index: 6, kind: input, shape index: {}]
  %s7 = inlined_call_operand.vmem [shape: f32[50,128], index: 7, kind: input, shape index: {}]
  %s8 = inlined_call_operand.vmem [shape: f32[1,128], index: 8, kind: input, shape index: {}]
  %s9 = inlined_call_operand.vmem [shape: f32[2,50,128], index: 9, kind: output, shape index: {}]
  %s10 = sld [smem:[#allocation0]]
  $region46: #{tpu_custom_call.1} parent=0
    _
  %s12 = ssub.s32 1, %s10
  %s13 = scalar_select 0, %s12, %s10
  // Predicated region
  $region2: #{tpu_custom_call.1} parent=0 // pred_check
    _
  $region3: #{tpu_custom_call.1} parent=0 // pred_check_branch
    %15 = sbr.rel (0) target = $region5
  $region4: #{tpu_custom_call.1} parent=0 // pred_region
    _
  $region5: #{tpu_custom_call.1} parent=0 // pred_fallthru
    _
  // Predicated region
  $region6: #{tpu_custom_call.1} parent=0 // pred_check
    _
  $region7: #{tpu_custom_call.1} parent=0 // pred_check_branch
    %17 = sbr.rel (0) target = $region9
  $region8: #{tpu_custom_call.1} parent=0 // pred_region
    _
  $region9: #{tpu_custom_call.1} parent=0 // pred_fallthru
    _
  // Predicated region
  $region10: #{tpu_custom_call.1} parent=0 // pred_check
    _
  $region11: #{tpu_custom_call.1} parent=0 // pred_check_branch
    %19 = sbr.rel (0) target = $region13
  $region12: #{tpu_custom_call.1} parent=0 // pred_region
    _
  $region13: #{tpu_custom_call.1} parent=0 // pred_fallthru
    _
  // Predicated region
  $region14: #{tpu_custom_call.1} parent=0 // pred_check
    _
  $region15: #{tpu_custom_call.1} parent=0 // pred_check_branch
    %21 = sbr.rel (0) target = $region17
  $region16: #{tpu_custom_call.1} parent=0 // pred_region
    _
  $region17: #{tpu_custom_call.1} parent=0 // pred_fallthru
    _
  // Predicated region
  $region18: #{tpu_custom_call.1} parent=0 // pred_check
    _
  $region19: #{tpu_custom_call.1} parent=0 // pred_check_branch
    %23 = sbr.rel (0) target = $region21
  $region20: #{tpu_custom_call.1} parent=0 // pred_region
    _
  $region21: #{tpu_custom_call.1} parent=0 // pred_fallthru
    _
  // Predicated region
  $region22: #{tpu_custom_call.1} parent=0 // pred_check
    _
  $region23: #{tpu_custom_call.1} parent=0 // pred_check_branch
    %25 = sbr.rel (0) target = $region25
  $region24: #{tpu_custom_call.1} parent=0 // pred_region
    _
  $region25: #{tpu_custom_call.1} parent=0 // pred_fallthru
    _
  // Predicated region
  $region26: #{tpu_custom_call.1} parent=0 // pred_check
    _
  $region27: #{tpu_custom_call.1} parent=0 // pred_check_branch
    %27 = sbr.rel (0) target = $region29
  $region28: #{tpu_custom_call.1} parent=0 // pred_region
    _
  $region29: #{tpu_custom_call.1} parent=0 // pred_fallthru
    _
  // Predicated region
  $region30: #{tpu_custom_call.1} parent=0 // pred_check
    _
  $region31: #{tpu_custom_call.1} parent=0 // pred_check_branch
    %29 = sbr.rel (0) target = $region33
  $region32: #{tpu_custom_call.1} parent=0 // pred_region
    _
  $region33: #{tpu_custom_call.1} parent=0 // pred_fallthru
    _
  // Predicated region
  $region34: #{tpu_custom_call.1} parent=0 // pred_check
    _
  $region35: #{tpu_custom_call.1} parent=0 // pred_check_branch
    %31 = sbr.rel (0) target = $region37
  $region36: #{tpu_custom_call.1} parent=0 // pred_region
    _
  $region37: #{tpu_custom_call.1} parent=0 // pred_fallthru
    _
  %v32 = vld [vmem:[%s2] sm:$0x3]
  %v33 = vld [vmem:[%s3] sm:$0xff]
  %v34 = vld [vmem:[%s3 + $0x8] sm:$0xff]
  %v35 = vld [vmem:[%s3 + $0x10] sm:$0xff]
  %v36 = vld [vmem:[%s3 + $0x18] sm:$0xff]
  %v37 = vld [vmem:[%s5] sm:$0xff]
  %v38 = vld [vmem:[%s5 + $0x8] sm:$0xff]
  %v39 = vld [vmem:[%s5 + $0x10] sm:$0xff]
  %v40 = vld [vmem:[%s5 + $0x18] sm:$0xff]
  %v41 = vld [vmem:[%s4] sm:$0x1]
  %v42 = vld [vmem:[%s6] sm:$0x1]
  %v43 = vld [vmem:[%s7] sm:$0xff]
  %v44 = vld [vmem:[%s7 + $0x8] sm:$0xff]
  %v45 = vld [vmem:[%s7 + $0x10] sm:$0xff]
  %v46 = vld [vmem:[%s7 + $0x18] sm:$0xff]
  %v47 = vld [vmem:[%s7 + $0x20] sm:$0xff]
  %v48 = vld [vmem:[%s7 + $0x28] sm:$0xff]
  %v49 = vld [vmem:[%s7 + $0x30] sm:$0x3]
  %v50 = vld [vmem:[%s8] sm:$0x1]
  %v51 = vld [vmem:[%s0] sm:$0xff]
  %v52 = vld [vmem:[%s0 + $0x8] sm:$0xff]
  %v53 = vld [vmem:[%s0 + $0x10] sm:$0xff]
  %v54 = vld [vmem:[%s0 + $0x18] sm:$0xff]
  %v55 = vld [vmem:[%s0 + $0x20] sm:$0xff]
  %v56 = vld [vmem:[%s0 + $0x28] sm:$0xff]
  %v57 = vld [vmem:[%s0 + $0x30] sm:$0x3]
  %v58 = vld [vmem:[%s1] sm:$0xff]
  %v59 = vld [vmem:[%s1 + $0x8] sm:$0xff]
  %v60 = vld [vmem:[%s1 + $0x10] sm:$0xff]
  %v61 = vld [vmem:[%s1 + $0x18] sm:$0xff]
  %v62 = vld [vmem:[%s1 + $0x20] sm:$0xff]
  %v63 = vld [vmem:[%s1 + $0x28] sm:$0xff]
  %v64 = vld [vmem:[%s1 + $0x30] sm:$0x3]
  %v65 = vadd.f32 %v41, %v32
  %v66 = vadd.f32 %v42, %v32
  %v68 = vlaneseq
  %v69 = vshrl.u32 %v68, 7
  %v70 = vsub.s32 0, %v69
  %v71 = vrot.slane %v65, %v70
  %vm73 = vcmask 261120
  %v75 = vsel %vm73, %v51, 0
  %v78 = vsel %vm73, %v52, 0
  %v81 = vsel %vm73, %v53, 0
  %v84 = vsel %vm73, %v54, 0
  %v87 = vsel %vm73, %v55, 0
  %v90 = vsel %vm73, %v56, 0
  %v93 = vsel %vm73, %v57, 0
  %95 = vmatprep.subr.mxu0 0.0
  %96 = vmatpush1.msra.mxu0 %v33
  %97 = vmatprep.subr.mxu0 0.0
  %98 = vmatpush1.msra.mxu0 %v34
  %99 = vmatprep.subr.mxu0 0.0
  %100 = vmatpush1.msra.mxu0 %v35
  %101 = vmatprep.subr.mxu0 0.0
  %102 = vmatpush1.msra.mxu0 %v36
  %103 = vmatprep.subr.mxu0 0.0
  %104 = vmatpush1.msra.mxu0 0.0
  %105 = vmatprep.subr.mxu0 0.0
  %106 = vmatpush1.msra.mxu0 0.0
  %107 = vmatprep.subr.mxu0 0.0
  %108 = vmatpush1.msra.mxu0 0.0
  %109 = vmatprep.subr.mxu0 0.0
  %110 = vmatpush1.msra.mxu0 0.0
  %111 = vmatprep.subr.mxu0 0.0
  %112 = vmatpush1.msra.mxu0 0.0
  %113 = vmatprep.subr.mxu0 0.0
  %114 = vmatpush1.msra.mxu0 0.0
  %115 = vmatprep.subr.mxu0 0.0
  %116 = vmatpush1.msra.mxu0 0.0
  %117 = vmatprep.subr.mxu0 0.0
  %118 = vmatpush1.msra.mxu0 0.0
  %119 = vmatprep.subr.mxu0 0.0
  %120 = vmatpush1.msra.mxu0 0.0
  %121 = vmatprep.subr.mxu0 0.0
  %122 = vmatpush1.msra.mxu0 0.0
  %123 = vmatprep.subr.mxu0 0.0
  %124 = vmatpush1.msra.mxu0 0.0
  %125 = vmatprep.subr.mxu0 0.0
  %126 = vmatpush1.msra.mxu0 0.0
  %127 = vmatprep.subr.mxu0 0.0
  %128 = vmatpush1.msra.mxu0 0.0
  %129 = vmatprep.subr.mxu0 0.0
  %130 = vmatpush1.msra.mxu0 0.0
  %131 = vmatprep.subr.mxu0 0.0
  %132 = vmatpush1.msra.mxu0 0.0
  %133 = vmatprep.subr.mxu0 0.0
  %134 = vmatpush1.msra.mxu0 0.0
  %135 = vmatprep.subr.mxu0 0.0
  %136 = vmatpush1.msra.mxu0 0.0
  %137 = vmatprep.subr.mxu0 0.0
  %138 = vmatpush1.msra.mxu0 0.0
  %139 = vmatprep.subr.mxu0 0.0
  %140 = vmatpush1.msra.mxu0 0.0
  %141 = vmatprep.subr.mxu0 0.0
  %142 = vmatpush1.msra.mxu0 0.0
  %143 = vmatprep.subr.mxu0 0.0
  %144 = vmatpush1.msra.mxu0 0.0
  %145 = vmatprep.subr.mxu0 0.0
  %146 = vmatpush1.msra.mxu0 0.0
  %147 = vmatprep.subr.mxu0 0.0
  %148 = vmatpush1.msra.mxu0 0.0
  %149 = vmatprep.subr.mxu0 0.0
  %150 = vmatpush1.msra.mxu0 0.0
  %151 = vmatprep.subr.mxu0 0.0
  %152 = vmatpush1.msra.mxu0 0.0
  %153 = vmatprep.subr.mxu0 0.0
  %154 = vmatpush1.msra.mxu0 0.0
  %155 = vmatprep.subr.mxu0 0.0
  %156 = vmatpush1.msra.mxu0 0.0
  %157 = vmatprep.subr.mxu0 0.0
  %158 = vmatpush1.msra.mxu0 0.0
  %159 = vmatprep.mubr.f32.mxu0 0.0
  %160 = vmatmul.mubr.f32.gmra.mrb[0].mxu0 %v75
  %v161 = vpop.f32.mrb[0].mxu0
  %v162 = vadd.f32 %v71, %v161
  %v163 = vpop.f32.mrb[0].mxu0
  %164 = vmatprep.mubr.f32.mxu0 0.0
  %165 = vmatmul.mubr.f32.gmra.mrb[0].mxu0 %v78
  %v166 = vpop.f32.mrb[0].mxu0
  %v167 = vadd.f32 %v71, %v166
  %v168 = vpop.f32.mrb[0].mxu0
  %169 = vmatprep.mubr.f32.mxu0 0.0
  %170 = vmatmul.mubr.f32.gmra.mrb[0].mxu0 %v81
  %v171 = vpop.f32.mrb[0].mxu0
  %v172 = vadd.f32 %v71, %v171
  %v173 = vpop.f32.mrb[0].mxu0
  %174 = vmatprep.mubr.f32.mxu0 0.0
  %175 = vmatmul.mubr.f32.gmra.mrb[0].mxu0 %v84
  %v176 = vpop.f32.mrb[0].mxu0
  %v177 = vadd.f32 %v71, %v176
  %v178 = vpop.f32.mrb[0].mxu0
  %179 = vmatprep.mubr.f32.mxu0 0.0
  %180 = vmatmul.mubr.f32.gmra.mrb[0].mxu0 %v87
  %v181 = vpop.f32.mrb[0].mxu0
  %v182 = vadd.f32 %v71, %v181
  %v183 = vpop.f32.mrb[0].mxu0
  %184 = vmatprep.mubr.f32.mxu0 0.0
  %185 = vmatmul.mubr.f32.gmra.mrb[0].mxu0 %v90
  %v186 = vpop.f32.mrb[0].mxu0
  %v187 = vadd.f32 %v71, %v186
  %v188 = vpop.f32.mrb[0].mxu0
  %189 = vmatprep.mubr.f32.mxu0 0.0
  %190 = vmatmul.mubr.f32.gmra.mrb[0].mxu0 %v93
  %v191 = vpop.f32.mrb[0].mxu0
  %v192 = vadd.f32 %v71, %v191
  %v193 = vpop.f32.mrb[0].mxu0
  %194 = vdwg.mxu0
  %v196 = vlaneseq
  %v197 = vshrl.u32 %v196, 7
  %v198 = vsub.s32 0, %v197
  %v199 = vrot.slane %v66, %v198
  %v202 = vsel %vm73, %v58, 0
  %v205 = vsel %vm73, %v59, 0
  %v208 = vsel %vm73, %v60, 0
  %v211 = vsel %vm73, %v61, 0
  %v214 = vsel %vm73, %v62, 0
  %v217 = vsel %vm73, %v63, 0
  %v220 = vsel %vm73, %v64, 0
  %222 = vmatprep.subr.mxu0 0.0
  %223 = vmatpush1.msra.mxu0 %v37
  %224 = vmatprep.subr.mxu0 0.0
  %225 = vmatpush1.msra.mxu0 %v38
  %226 = vmatprep.subr.mxu0 0.0
  %227 = vmatpush1.msra.mxu0 %v39
  %228 = vmatprep.subr.mxu0 0.0
  %229 = vmatpush1.msra.mxu0 %v40
  %230 = vmatprep.subr.mxu0 0.0
  %231 = vmatpush1.msra.mxu0 0.0
  %232 = vmatprep.subr.mxu0 0.0
  %233 = vmatpush1.msra.mxu0 0.0
  %234 = vmatprep.subr.mxu0 0.0
  %235 = vmatpush1.msra.mxu0 0.0
  %236 = vmatprep.subr.mxu0 0.0
  %237 = vmatpush1.msra.mxu0 0.0
  %238 = vmatprep.subr.mxu0 0.0
  %239 = vmatpush1.msra.mxu0 0.0
  %240 = vmatprep.subr.mxu0 0.0
  %241 = vmatpush1.msra.mxu0 0.0
  %242 = vmatprep.subr.mxu0 0.0
  %243 = vmatpush1.msra.mxu0 0.0
  %244 = vmatprep.subr.mxu0 0.0
  %245 = vmatpush1.msra.mxu0 0.0
  %246 = vmatprep.subr.mxu0 0.0
  %247 = vmatpush1.msra.mxu0 0.0
  %248 = vmatprep.subr.mxu0 0.0
  %249 = vmatpush1.msra.mxu0 0.0
  %250 = vmatprep.subr.mxu0 0.0
  %251 = vmatpush1.msra.mxu0 0.0
  %252 = vmatprep.subr.mxu0 0.0
  %253 = vmatpush1.msra.mxu0 0.0
  %254 = vmatprep.subr.mxu0 0.0
  %255 = vmatpush1.msra.mxu0 0.0
  %256 = vmatprep.subr.mxu0 0.0
  %257 = vmatpush1.msra.mxu0 0.0
  %258 = vmatprep.subr.mxu0 0.0
  %259 = vmatpush1.msra.mxu0 0.0
  %260 = vmatprep.subr.mxu0 0.0
  %261 = vmatpush1.msra.mxu0 0.0
  %262 = vmatprep.subr.mxu0 0.0
  %263 = vmatpush1.msra.mxu0 0.0
  %264 = vmatprep.subr.mxu0 0.0
  %265 = vmatpush1.msra.mxu0 0.0
  %266 = vmatprep.subr.mxu0 0.0
  %267 = vmatpush1.msra.mxu0 0.0
  %268 = vmatprep.subr.mxu0 0.0
  %269 = vmatpush1.msra.mxu0 0.0
  %270 = vmatprep.subr.mxu0 0.0
  %271 = vmatpush1.msra.mxu0 0.0
  %272 = vmatprep.subr.mxu0 0.0
  %273 = vmatpush1.msra.mxu0 0.0
  %274 = vmatprep.subr.mxu0 0.0
  %275 = vmatpush1.msra.mxu0 0.0
  %276 = vmatprep.subr.mxu0 0.0
  %277 = vmatpush1.msra.mxu0 0.0
  %278 = vmatprep.subr.mxu0 0.0
  %279 = vmatpush1.msra.mxu0 0.0
  %280 = vmatprep.subr.mxu0 0.0
  %281 = vmatpush1.msra.mxu0 0.0
  %282 = vmatprep.subr.mxu0 0.0
  %283 = vmatpush1.msra.mxu0 0.0
  %284 = vmatprep.subr.mxu0 0.0
  %285 = vmatpush1.msra.mxu0 0.0
  %286 = vmatprep.mubr.f32.mxu0 0.0
  %287 = vmatmul.mubr.f32.gmra.mrb[0].mxu0 %v202
  %v288 = vpop.f32.mrb[0].mxu0
  %v289 = vadd.f32 %v199, %v288
  %v290 = vpop.f32.mrb[0].mxu0
  %291 = vmatprep.mubr.f32.mxu0 0.0
  %292 = vmatmul.mubr.f32.gmra.mrb[0].mxu0 %v205
  %v293 = vpop.f32.mrb[0].mxu0
  %v294 = vadd.f32 %v199, %v293
  %v295 = vpop.f32.mrb[0].mxu0
  %296 = vmatprep.mubr.f32.mxu0 0.0
  %297 = vmatmul.mubr.f32.gmra.mrb[0].mxu0 %v208
  %v298 = vpop.f32.mrb[0].mxu0
  %v299 = vadd.f32 %v199, %v298
  %v300 = vpop.f32.mrb[0].mxu0
  %301 = vmatprep.mubr.f32.mxu0 0.0
  %302 = vmatmul.mubr.f32.gmra.mrb[0].mxu0 %v211
  %v303 = vpop.f32.mrb[0].mxu0
  %v304 = vadd.f32 %v199, %v303
  %v305 = vpop.f32.mrb[0].mxu0
  %306 = vmatprep.mubr.f32.mxu0 0.0
  %307 = vmatmul.mubr.f32.gmra.mrb[0].mxu0 %v214
  %v308 = vpop.f32.mrb[0].mxu0
  %v309 = vadd.f32 %v199, %v308
  %v310 = vpop.f32.mrb[0].mxu0
  %311 = vmatprep.mubr.f32.mxu0 0.0
  %312 = vmatmul.mubr.f32.gmra.mrb[0].mxu0 %v217
  %v313 = vpop.f32.mrb[0].mxu0
  %v314 = vadd.f32 %v199, %v313
  %v315 = vpop.f32.mrb[0].mxu0
  %316 = vmatprep.mubr.f32.mxu0 0.0
  %317 = vmatmul.mubr.f32.gmra.mrb[0].mxu0 %v220
  %v318 = vpop.f32.mrb[0].mxu0
  %v319 = vadd.f32 %v199, %v318
  %v320 = vpop.f32.mrb[0].mxu0
  %321 = vdwg.mxu0
  %v323 = vsel %vm73, %v162, 0
  %v326 = vsel %vm73, %v167, 0
  %v329 = vsel %vm73, %v172, 0
  %v332 = vsel %vm73, %v177, 0
  %v335 = vsel %vm73, %v182, 0
  %v338 = vsel %vm73, %v187, 0
  %v341 = vsel %vm73, %v192, 0
  %v344 = vsel %vm73, %v289, 0
  %v347 = vsel %vm73, %v294, 0
  %v350 = vsel %vm73, %v299, 0
  %v353 = vsel %vm73, %v304, 0
  %v356 = vsel %vm73, %v309, 0
  %v359 = vsel %vm73, %v314, 0
  %v362 = vsel %vm73, %v319, 0
  %364 = vmatprep.subr.mxu0 0.0
  %365 = vmatpush1.xpose.msra.mxu0 %v344
  %366 = vmatprep.subr.mxu0 0.0
  %367 = vmatpush1.xpose.msra.mxu0 %v347
  %368 = vmatprep.subr.mxu0 0.0
  %369 = vmatpush1.xpose.msra.mxu0 %v350
  %370 = vmatprep.subr.mxu0 0.0
  %371 = vmatpush1.xpose.msra.mxu0 %v353
  %372 = vmatprep.subr.mxu0 0.0
  %373 = vmatpush1.xpose.msra.mxu0 %v356
  %374 = vmatprep.subr.mxu0 0.0
  %375 = vmatpush1.xpose.msra.mxu0 %v359
  %376 = vmatprep.subr.mxu0 0.0
  %377 = vmatpush1.xpose.msra.mxu0 %v362
  %378 = vmatprep.subr.mxu0 0.0
  %379 = vmatpush1.xpose.msra.mxu0 0.0
  %380 = vmatprep.subr.mxu0 0.0
  %381 = vmatpush1.xpose.msra.mxu0 0.0
  %382 = vmatprep.subr.mxu0 0.0
  %383 = vmatpush1.xpose.msra.mxu0 0.0
  %384 = vmatprep.subr.mxu0 0.0
  %385 = vmatpush1.xpose.msra.mxu0 0.0
  %386 = vmatprep.subr.mxu0 0.0
  %387 = vmatpush1.xpose.msra.mxu0 0.0
  %388 = vmatprep.subr.mxu0 0.0
  %389 = vmatpush1.xpose.msra.mxu0 0.0
  %390 = vmatprep.subr.mxu0 0.0
  %391 = vmatpush1.xpose.msra.mxu0 0.0
  %392 = vmatprep.subr.mxu0 0.0
  %393 = vmatpush1.xpose.msra.mxu0 0.0
  %394 = vmatprep.subr.mxu0 0.0
  %395 = vmatpush1.xpose.msra.mxu0 0.0
  %396 = vmatprep.subr.mxu0 0.0
  %397 = vmatpush1.xpose.msra.mxu0 0.0
  %398 = vmatprep.subr.mxu0 0.0
  %399 = vmatpush1.xpose.msra.mxu0 0.0
  %400 = vmatprep.subr.mxu0 0.0
  %401 = vmatpush1.xpose.msra.mxu0 0.0
  %402 = vmatprep.subr.mxu0 0.0
  %403 = vmatpush1.xpose.msra.mxu0 0.0
  %404 = vmatprep.subr.mxu0 0.0
  %405 = vmatpush1.xpose.msra.mxu0 0.0
  %406 = vmatprep.subr.mxu0 0.0
  %407 = vmatpush1.xpose.msra.mxu0 0.0
  %408 = vmatprep.subr.mxu0 0.0
  %409 = vmatpush1.xpose.msra.mxu0 0.0
  %410 = vmatprep.subr.mxu0 0.0
  %411 = vmatpush1.xpose.msra.mxu0 0.0
  %412 = vmatprep.subr.mxu0 0.0
  %413 = vmatpush1.xpose.msra.mxu0 0.0
  %414 = vmatprep.subr.mxu0 0.0
  %415 = vmatpush1.xpose.msra.mxu0 0.0
  %416 = vmatprep.subr.mxu0 0.0
  %417 = vmatpush1.xpose.msra.mxu0 0.0
  %418 = vmatprep.subr.mxu0 0.0
  %419 = vmatpush1.xpose.msra.mxu0 0.0
  %420 = vmatprep.subr.mxu0 0.0
  %421 = vmatpush1.xpose.msra.mxu0 0.0
  %422 = vmatprep.subr.mxu0 0.0
  %423 = vmatpush1.xpose.msra.mxu0 0.0
  %424 = vmatprep.subr.mxu0 0.0
  %425 = vmatpush1.xpose.msra.mxu0 0.0
  %426 = vmatprep.subr.mxu0 0.0
  %427 = vmatpush1.xpose.msra.mxu0 0.0
  %428 = vmatprep.mubr.f32.mxu0 0.0
  %429 = vmatmul.mubr.f32.gmra.mrb[0].mxu0 %v323
  %v430 = vpop.f32.mrb[0].mxu0
  %v431 = vadd.f32 0.0, %v430
  %v432 = vpop.f32.mrb[0].mxu0
  %433 = vmatprep.mubr.f32.mxu0 0.0
  %434 = vmatmul.mubr.f32.gmra.mrb[0].mxu0 %v326
  %v435 = vpop.f32.mrb[0].mxu0
  %v436 = vadd.f32 0.0, %v435
  %v437 = vpop.f32.mrb[0].mxu0
  %438 = vmatprep.mubr.f32.mxu0 0.0
  %439 = vmatmul.mubr.f32.gmra.mrb[0].mxu0 %v329
  %v440 = vpop.f32.mrb[0].mxu0
  %v441 = vadd.f32 0.0, %v440
  %v442 = vpop.f32.mrb[0].mxu0
  %443 = vmatprep.mubr.f32.mxu0 0.0
  %444 = vmatmul.mubr.f32.gmra.mrb[0].mxu0 %v332
  %v445 = vpop.f32.mrb[0].mxu0
  %v446 = vadd.f32 0.0, %v445
  %v447 = vpop.f32.mrb[0].mxu0
  %448 = vmatprep.mubr.f32.mxu0 0.0
  %449 = vmatmul.mubr.f32.gmra.mrb[0].mxu0 %v335
  %v450 = vpop.f32.mrb[0].mxu0
  %v451 = vadd.f32 0.0, %v450
  %v452 = vpop.f32.mrb[0].mxu0
  %453 = vmatprep.mubr.f32.mxu0 0.0
  %454 = vmatmul.mubr.f32.gmra.mrb[0].mxu0 %v338
  %v455 = vpop.f32.mrb[0].mxu0
  %v456 = vadd.f32 0.0, %v455
  %v457 = vpop.f32.mrb[0].mxu0
  %458 = vmatprep.mubr.f32.mxu0 0.0
  %459 = vmatmul.mubr.f32.gmra.mrb[0].mxu0 %v341
  %v460 = vpop.f32.mrb[0].mxu0
  %v461 = vadd.f32 0.0, %v460
  %v462 = vpop.f32.mrb[0].mxu0
  %463 = vdwg.mxu0
  %vm464 = vcmask 408576
  %v465 = vsel %vm464, %v431, -inf
  %466 = vmax.xlane.f32.xlu0 %v465
  %v467 = vpop.xlane.xlu0 %466
  %v468 = vsel %vm464, %v436, -inf
  %469 = vmax.xlane.f32.xlu0 %v468
  %v470 = vpop.xlane.xlu0 %469
  %v471 = vsel %vm464, %v441, -inf
  %472 = vmax.xlane.f32.xlu0 %v471
  %v473 = vpop.xlane.xlu0 %472
  %v474 = vsel %vm464, %v446, -inf
  %475 = vmax.xlane.f32.xlu0 %v474
  %v476 = vpop.xlane.xlu0 %475
  %v477 = vsel %vm464, %v451, -inf
  %478 = vmax.xlane.f32.xlu0 %v477
  %v479 = vpop.xlane.xlu0 %478
  %v480 = vsel %vm464, %v456, -inf
  %481 = vmax.xlane.f32.xlu0 %v480
  %v482 = vpop.xlane.xlu0 %481
  %vm483 = vcmask 402432
  %v484 = vsel %vm483, %v461, -inf
  %485 = vmax.xlane.f32.xlu0 %v484
  %v486 = vpop.xlane.xlu0 %485
  %v487 = vsub.f32 %v431, %v467
  %v488 = vsub.f32 %v436, %v470
  %v489 = vsub.f32 %v441, %v473
  %v490 = vsub.f32 %v446, %v476
  %v491 = vsub.f32 %v451, %v479
  %v492 = vsub.f32 %v456, %v482
  %v493 = vsub.f32 %v461, %v486
  %v494 = vmul.f32 %v487, 1.442695
  %v495 = vpow.pop %v494
  %v496 = vmul.f32 %v488, 1.442695
  %v497 = vpow.pop %v496
  %v498 = vmul.f32 %v489, 1.442695
  %v499 = vpow.pop %v498
  %v500 = vmul.f32 %v490, 1.442695
  %v501 = vpow.pop %v500
  %v502 = vmul.f32 %v491, 1.442695
  %v503 = vpow.pop %v502
  %v504 = vmul.f32 %v492, 1.442695
  %v505 = vpow.pop %v504
  %v506 = vmul.f32 %v493, 1.442695
  %v507 = vpow.pop %v506
  %v508 = vsel %vm464, %v495, 0.0
  %509 = vadd.xlane.f32.xlu0 %v508
  %v510 = vpop.xlane.xlu0 %509
  %v511 = vsel %vm464, %v497, 0.0
  %512 = vadd.xlane.f32.xlu0 %v511
  %v513 = vpop.xlane.xlu0 %512
  %v514 = vsel %vm464, %v499, 0.0
  %515 = vadd.xlane.f32.xlu0 %v514
  %v516 = vpop.xlane.xlu0 %515
  %v517 = vsel %vm464, %v501, 0.0
  %518 = vadd.xlane.f32.xlu0 %v517
  %v519 = vpop.xlane.xlu0 %518
  %v520 = vsel %vm464, %v503, 0.0
  %521 = vadd.xlane.f32.xlu0 %v520
  %v522 = vpop.xlane.xlu0 %521
  %v523 = vsel %vm464, %v505, 0.0
  %524 = vadd.xlane.f32.xlu0 %v523
  %v525 = vpop.xlane.xlu0 %524
  %v526 = vsel %vm483, %v507, 0.0
  %527 = vadd.xlane.f32.xlu0 %v526
  %v528 = vpop.xlane.xlu0 %527
  %v529 = vrcp.pop %v510
  %v530 = vrcp.pop %v513
  %v531 = vrcp.pop %v516
  %v532 = vrcp.pop %v519
  %v533 = vrcp.pop %v522
  %v534 = vrcp.pop %v525
  %v535 = vrcp.pop %v528
  %v536 = vmul.f32 %v495, %v529
  %v537 = vmul.f32 %v497, %v530
  %v538 = vmul.f32 %v499, %v531
  %v539 = vmul.f32 %v501, %v532
  %v540 = vmul.f32 %v503, %v533
  %v541 = vmul.f32 %v505, %v534
  %v542 = vmul.f32 %v507, %v535
  %v544 = vlaneseq
  %v545 = vshrl.u32 %v544, 7
  %v546 = vsub.s32 0, %v545
  %v547 = vrot.slane %v50, %v546
  %v550 = vsel %vm464, %v536, 0
  %v553 = vsel %vm464, %v537, 0
  %v556 = vsel %vm464, %v538, 0
  %v559 = vsel %vm464, %v539, 0
  %v562 = vsel %vm464, %v540, 0
  %v565 = vsel %vm464, %v541, 0
  %v568 = vsel %vm464, %v542, 0
  %vm570 = vcmask 1041408
  %v572 = vsel %vm570, %v49, 0
  %574 = vmatprep.subr.mxu0 0.0
  %575 = vmatpush1.msra.mxu0 %v43
  %576 = vmatprep.subr.mxu0 0.0
  %577 = vmatpush1.msra.mxu0 %v44
  %578 = vmatprep.subr.mxu0 0.0
  %579 = vmatpush1.msra.mxu0 %v45
  %580 = vmatprep.subr.mxu0 0.0
  %581 = vmatpush1.msra.mxu0 %v46
  %582 = vmatprep.subr.mxu0 0.0
  %583 = vmatpush1.msra.mxu0 %v47
  %584 = vmatprep.subr.mxu0 0.0
  %585 = vmatpush1.msra.mxu0 %v48
  %586 = vmatprep.subr.mxu0 0.0
  %587 = vmatpush1.msra.mxu0 %v572
  %588 = vmatprep.subr.mxu0 0.0
  %589 = vmatpush1.msra.mxu0 0.0
  %590 = vmatprep.subr.mxu0 0.0
  %591 = vmatpush1.msra.mxu0 0.0
  %592 = vmatprep.subr.mxu0 0.0
  %593 = vmatpush1.msra.mxu0 0.0
  %594 = vmatprep.subr.mxu0 0.0
  %595 = vmatpush1.msra.mxu0 0.0
  %596 = vmatprep.subr.mxu0 0.0
  %597 = vmatpush1.msra.mxu0 0.0
  %598 = vmatprep.subr.mxu0 0.0
  %599 = vmatpush1.msra.mxu0 0.0
  %600 = vmatprep.subr.mxu0 0.0
  %601 = vmatpush1.msra.mxu0 0.0
  %602 = vmatprep.subr.mxu0 0.0
  %603 = vmatpush1.msra.mxu0 0.0
  %604 = vmatprep.subr.mxu0 0.0
  %605 = vmatpush1.msra.mxu0 0.0
  %606 = vmatprep.subr.mxu0 0.0
  %607 = vmatpush1.msra.mxu0 0.0
  %608 = vmatprep.subr.mxu0 0.0
  %609 = vmatpush1.msra.mxu0 0.0
  %610 = vmatprep.subr.mxu0 0.0
  %611 = vmatpush1.msra.mxu0 0.0
  %612 = vmatprep.subr.mxu0 0.0
  %613 = vmatpush1.msra.mxu0 0.0
  %614 = vmatprep.subr.mxu0 0.0
  %615 = vmatpush1.msra.mxu0 0.0
  %616 = vmatprep.subr.mxu0 0.0
  %617 = vmatpush1.msra.mxu0 0.0
  %618 = vmatprep.subr.mxu0 0.0
  %619 = vmatpush1.msra.mxu0 0.0
  %620 = vmatprep.subr.mxu0 0.0
  %621 = vmatpush1.msra.mxu0 0.0
  %622 = vmatprep.subr.mxu0 0.0
  %623 = vmatpush1.msra.mxu0 0.0
  %624 = vmatprep.subr.mxu0 0.0
  %625 = vmatpush1.msra.mxu0 0.0
  %626 = vmatprep.subr.mxu0 0.0
  %627 = vmatpush1.msra.mxu0 0.0
  %628 = vmatprep.subr.mxu0 0.0
  %629 = vmatpush1.msra.mxu0 0.0
  %630 = vmatprep.subr.mxu0 0.0
  %631 = vmatpush1.msra.mxu0 0.0
  %632 = vmatprep.subr.mxu0 0.0
  %633 = vmatpush1.msra.mxu0 0.0
  %634 = vmatprep.subr.mxu0 0.0
  %635 = vmatpush1.msra.mxu0 0.0
  %636 = vmatprep.subr.mxu0 0.0
  %637 = vmatpush1.msra.mxu0 0.0
  %638 = vmatprep.mubr.f32.mxu0 0.0
  %639 = vmatmul.mubr.f32.gmra.mrb[0].mxu0 %v550
  %v640 = vpop.f32.mrb[0].mxu0
  %v641 = vadd.f32 %v547, %v640
  %v642 = vpop.f32.mrb[0].mxu0
  %643 = vmatprep.mubr.f32.mxu0 0.0
  %644 = vmatmul.mubr.f32.gmra.mrb[0].mxu0 %v553
  %v645 = vpop.f32.mrb[0].mxu0
  %v646 = vadd.f32 %v547, %v645
  %v647 = vpop.f32.mrb[0].mxu0
  %648 = vmatprep.mubr.f32.mxu0 0.0
  %649 = vmatmul.mubr.f32.gmra.mrb[0].mxu0 %v556
  %v650 = vpop.f32.mrb[0].mxu0
  %v651 = vadd.f32 %v547, %v650
  %v652 = vpop.f32.mrb[0].mxu0
  %653 = vmatprep.mubr.f32.mxu0 0.0
  %654 = vmatmul.mubr.f32.gmra.mrb[0].mxu0 %v559
  %v655 = vpop.f32.mrb[0].mxu0
  %v656 = vadd.f32 %v547, %v655
  %v657 = vpop.f32.mrb[0].mxu0
  %658 = vmatprep.mubr.f32.mxu0 0.0
  %659 = vmatmul.mubr.f32.gmra.mrb[0].mxu0 %v562
  %v660 = vpop.f32.mrb[0].mxu0
  %v661 = vadd.f32 %v547, %v660
  %v662 = vpop.f32.mrb[0].mxu0
  %663 = vmatprep.mubr.f32.mxu0 0.0
  %664 = vmatmul.mubr.f32.gmra.mrb[0].mxu0 %v565
  %v665 = vpop.f32.mrb[0].mxu0
  %v666 = vadd.f32 %v547, %v665
  %v667 = vpop.f32.mrb[0].mxu0
  %668 = vmatprep.mubr.f32.mxu0 0.0
  %669 = vmatmul.mubr.f32.gmra.mrb[0].mxu0 %v568
  %v670 = vpop.f32.mrb[0].mxu0
  %v671 = vadd.f32 %v547, %v670
  %v672 = vpop.f32.mrb[0].mxu0
  %673 = vdwg.mxu0
  %674 = vst [vmem:[%s9] sm:$0xff] %v641
  %675 = vst [vmem:[%s9 + $0x8] sm:$0xff] %v646
  %676 = vst [vmem:[%s9 + $0x10] sm:$0xff] %v651
  %677 = vst [vmem:[%s9 + $0x18] sm:$0xff] %v656
  %678 = vst [vmem:[%s9 + $0x20] sm:$0xff] %v661
  %679 = vst [vmem:[%s9 + $0x28] sm:$0xff] %v666
  %680 = vst [vmem:[%s9 + $0x30] sm:$0x3] %v671
  %s681 = scalar_lea.vmem %s0, 56
  %v682 = vld [vmem:[%s681] sm:$0xff]
  %v683 = vld [vmem:[%s681 + $0x8] sm:$0xff]
  %v684 = vld [vmem:[%s681 + $0x10] sm:$0xff]
  %v685 = vld [vmem:[%s681 + $0x18] sm:$0xff]
  %v686 = vld [vmem:[%s681 + $0x20] sm:$0xff]
  %v687 = vld [vmem:[%s681 + $0x28] sm:$0xff]
  %v688 = vld [vmem:[%s681 + $0x30] sm:$0x3]
  %s689 = scalar_lea.vmem %s1, 56
  %v690 = vld [vmem:[%s689] sm:$0xff]
  %v691 = vld [vmem:[%s689 + $0x8] sm:$0xff]
  %v692 = vld [vmem:[%s689 + $0x10] sm:$0xff]
  %v693 = vld [vmem:[%s689 + $0x18] sm:$0xff]
  %v694 = vld [vmem:[%s689 + $0x20] sm:$0xff]
  %v695 = vld [vmem:[%s689 + $0x28] sm:$0xff]
  %v696 = vld [vmem:[%s689 + $0x30] sm:$0x3]
  %v699 = vunpack.c.l.s4 1966171168
  %v700 = vunpack.c.0.s8 %v699
  %v701 = vlaneseq
  %v702 = vshrl.u32 %v701, 7
  %v703 = vsub.s32 %v700, %v702
  %v704 = vrot.slane %v32, %v703
  %v705 = vcombine.high %v704, %v704
  %v707 = vunpack.c.l.s4 1966171168
  %v708 = vunpack.c.0.s8 %v707
  %v709 = vlaneseq
  %v710 = vshrl.u32 %v709, 7
  %v711 = vsub.s32 %v708, %v710
  %v712 = vrot.slane %v705, %v711
  %v714 = vadd.f32 %v41, %v712
  %v715 = vadd.f32 %v42, %v712
  %v717 = vlaneseq
  %v718 = vshrl.u32 %v717, 7
  %v719 = vsub.s32 0, %v718
  %v720 = vrot.slane %v714, %v719
  %v723 = vsel %vm73, %v682, 0
  %v726 = vsel %vm73, %v683, 0
  %v729 = vsel %vm73, %v684, 0
  %v732 = vsel %vm73, %v685, 0
  %v735 = vsel %vm73, %v686, 0
  %v738 = vsel %vm73, %v687, 0
  %v741 = vsel %vm73, %v688, 0
  %743 = vmatprep.subr.mxu0 0.0
  %744 = vmatpush1.msra.mxu0 %v33
  %745 = vmatprep.subr.mxu0 0.0
  %746 = vmatpush1.msra.mxu0 %v34
  %747 = vmatprep.subr.mxu0 0.0
  %748 = vmatpush1.msra.mxu0 %v35
  %749 = vmatprep.subr.mxu0 0.0
  %750 = vmatpush1.msra.mxu0 %v36
  %751 = vmatprep.subr.mxu0 0.0
  %752 = vmatpush1.msra.mxu0 0.0
  %753 = vmatprep.subr.mxu0 0.0
  %754 = vmatpush1.msra.mxu0 0.0
  %755 = vmatprep.subr.mxu0 0.0
  %756 = vmatpush1.msra.mxu0 0.0
  %757 = vmatprep.subr.mxu0 0.0
  %758 = vmatpush1.msra.mxu0 0.0
  %759 = vmatprep.subr.mxu0 0.0
  %760 = vmatpush1.msra.mxu0 0.0
  %761 = vmatprep.subr.mxu0 0.0
  %762 = vmatpush1.msra.mxu0 0.0
  %763 = vmatprep.subr.mxu0 0.0
  %764 = vmatpush1.msra.mxu0 0.0
  %765 = vmatprep.subr.mxu0 0.0
  %766 = vmatpush1.msra.mxu0 0.0
  %767 = vmatprep.subr.mxu0 0.0
  %768 = vmatpush1.msra.mxu0 0.0
  %769 = vmatprep.subr.mxu0 0.0
  %770 = vmatpush1.msra.mxu0 0.0
  %771 = vmatprep.subr.mxu0 0.0
  %772 = vmatpush1.msra.mxu0 0.0
  %773 = vmatprep.subr.mxu0 0.0
  %774 = vmatpush1.msra.mxu0 0.0
  %775 = vmatprep.subr.mxu0 0.0
  %776 = vmatpush1.msra.mxu0 0.0
  %777 = vmatprep.subr.mxu0 0.0
  %778 = vmatpush1.msra.mxu0 0.0
  %779 = vmatprep.subr.mxu0 0.0
  %780 = vmatpush1.msra.mxu0 0.0
  %781 = vmatprep.subr.mxu0 0.0
  %782 = vmatpush1.msra.mxu0 0.0
  %783 = vmatprep.subr.mxu0 0.0
  %784 = vmatpush1.msra.mxu0 0.0
  %785 = vmatprep.subr.mxu0 0.0
  %786 = vmatpush1.msra.mxu0 0.0
  %787 = vmatprep.subr.mxu0 0.0
  %788 = vmatpush1.msra.mxu0 0.0
  %789 = vmatprep.subr.mxu0 0.0
  %790 = vmatpush1.msra.mxu0 0.0
  %791 = vmatprep.subr.mxu0 0.0
  %792 = vmatpush1.msra.mxu0 0.0
  %793 = vmatprep.subr.mxu0 0.0
  %794 = vmatpush1.msra.mxu0 0.0
  %795 = vmatprep.subr.mxu0 0.0
  %796 = vmatpush1.msra.mxu0 0.0
  %797 = vmatprep.subr.mxu0 0.0
  %798 = vmatpush1.msra.mxu0 0.0
  %799 = vmatprep.subr.mxu0 0.0
  %800 = vmatpush1.msra.mxu0 0.0
  %801 = vmatprep.subr.mxu0 0.0
  %802 = vmatpush1.msra.mxu0 0.0
  %803 = vmatprep.subr.mxu0 0.0
  %804 = vmatpush1.msra.mxu0 0.0
  %805 = vmatprep.subr.mxu0 0.0
  %806 = vmatpush1.msra.mxu0 0.0
  %807 = vmatprep.mubr.f32.mxu0 0.0
  %808 = vmatmul.mubr.f32.gmra.mrb[0].mxu0 %v723
  %v809 = vpop.f32.mrb[0].mxu0
  %v810 = vadd.f32 %v720, %v809
  %v811 = vpop.f32.mrb[0].mxu0
  %812 = vmatprep.mubr.f32.mxu0 0.0
  %813 = vmatmul.mubr.f32.gmra.mrb[0].mxu0 %v726
  %v814 = vpop.f32.mrb[0].mxu0
  %v815 = vadd.f32 %v720, %v814
  %v816 = vpop.f32.mrb[0].mxu0
  %817 = vmatprep.mubr.f32.mxu0 0.0
  %818 = vmatmul.mubr.f32.gmra.mrb[0].mxu0 %v729
  %v819 = vpop.f32.mrb[0].mxu0
  %v820 = vadd.f32 %v720, %v819
  %v821 = vpop.f32.mrb[0].mxu0
  %822 = vmatprep.mubr.f32.mxu0 0.0
  %823 = vmatmul.mubr.f32.gmra.mrb[0].mxu0 %v732
  %v824 = vpop.f32.mrb[0].mxu0
  %v825 = vadd.f32 %v720, %v824
  %v826 = vpop.f32.mrb[0].mxu0
  %827 = vmatprep.mubr.f32.mxu0 0.0
  %828 = vmatmul.mubr.f32.gmra.mrb[0].mxu0 %v735
  %v829 = vpop.f32.mrb[0].mxu0
  %v830 = vadd.f32 %v720, %v829
  %v831 = vpop.f32.mrb[0].mxu0
  %832 = vmatprep.mubr.f32.mxu0 0.0
  %833 = vmatmul.mubr.f32.gmra.mrb[0].mxu0 %v738
  %v834 = vpop.f32.mrb[0].mxu0
  %v835 = vadd.f32 %v720, %v834
  %v836 = vpop.f32.mrb[0].mxu0
  %837 = vmatprep.mubr.f32.mxu0 0.0
  %838 = vmatmul.mubr.f32.gmra.mrb[0].mxu0 %v741
  %v839 = vpop.f32.mrb[0].mxu0
  %v840 = vadd.f32 %v720, %v839
  %v841 = vpop.f32.mrb[0].mxu0
  %842 = vdwg.mxu0
  %v844 = vlaneseq
  %v845 = vshrl.u32 %v844, 7
  %v846 = vsub.s32 0, %v845
  %v847 = vrot.slane %v715, %v846
  %v850 = vsel %vm73, %v690, 0
  %v853 = vsel %vm73, %v691, 0
  %v856 = vsel %vm73, %v692, 0
  %v859 = vsel %vm73, %v693, 0
  %v862 = vsel %vm73, %v694, 0
  %v865 = vsel %vm73, %v695, 0
  %v868 = vsel %vm73, %v696, 0
  %870 = vmatprep.subr.mxu0 0.0
  %871 = vmatpush1.msra.mxu0 %v37
  %872 = vmatprep.subr.mxu0 0.0
  %873 = vmatpush1.msra.mxu0 %v38
  %874 = vmatprep.subr.mxu0 0.0
  %875 = vmatpush1.msra.mxu0 %v39
  %876 = vmatprep.subr.mxu0 0.0
  %877 = vmatpush1.msra.mxu0 %v40
  %878 = vmatprep.subr.mxu0 0.0
  %879 = vmatpush1.msra.mxu0 0.0
  %880 = vmatprep.subr.mxu0 0.0
  %881 = vmatpush1.msra.mxu0 0.0
  %882 = vmatprep.subr.mxu0 0.0
  %883 = vmatpush1.msra.mxu0 0.0
  %884 = vmatprep.subr.mxu0 0.0
  %885 = vmatpush1.msra.mxu0 0.0
  %886 = vmatprep.subr.mxu0 0.0
  %887 = vmatpush1.msra.mxu0 0.0
  %888 = vmatprep.subr.mxu0 0.0
  %889 = vmatpush1.msra.mxu0 0.0
  %890 = vmatprep.subr.mxu0 0.0
  %891 = vmatpush1.msra.mxu0 0.0
  %892 = vmatprep.subr.mxu0 0.0
  %893 = vmatpush1.msra.mxu0 0.0
  %894 = vmatprep.subr.mxu0 0.0
  %895 = vmatpush1.msra.mxu0 0.0
  %896 = vmatprep.subr.mxu0 0.0
  %897 = vmatpush1.msra.mxu0 0.0
  %898 = vmatprep.subr.mxu0 0.0
  %899 = vmatpush1.msra.mxu0 0.0
  %900 = vmatprep.subr.mxu0 0.0
  %901 = vmatpush1.msra.mxu0 0.0
  %902 = vmatprep.subr.mxu0 0.0
  %903 = vmatpush1.msra.mxu0 0.0
  %904 = vmatprep.subr.mxu0 0.0
  %905 = vmatpush1.msra.mxu0 0.0
  %906 = vmatprep.subr.mxu0 0.0
  %907 = vmatpush1.msra.mxu0 0.0
  %908 = vmatprep.subr.mxu0 0.0
  %909 = vmatpush1.msra.mxu0 0.0
  %910 = vmatprep.subr.mxu0 0.0
  %911 = vmatpush1.msra.mxu0 0.0
  %912 = vmatprep.subr.mxu0 0.0
  %913 = vmatpush1.msra.mxu0 0.0
  %914 = vmatprep.subr.mxu0 0.0
  %915 = vmatpush1.msra.mxu0 0.0
  %916 = vmatprep.subr.mxu0 0.0
  %917 = vmatpush1.msra.mxu0 0.0
  %918 = vmatprep.subr.mxu0 0.0
  %919 = vmatpush1.msra.mxu0 0.0
  %920 = vmatprep.subr.mxu0 0.0
  %921 = vmatpush1.msra.mxu0 0.0
  %922 = vmatprep.subr.mxu0 0.0
  %923 = vmatpush1.msra.mxu0 0.0
  %924 = vmatprep.subr.mxu0 0.0
  %925 = vmatpush1.msra.mxu0 0.0
  %926 = vmatprep.subr.mxu0 0.0
  %927 = vmatpush1.msra.mxu0 0.0
  %928 = vmatprep.subr.mxu0 0.0
  %929 = vmatpush1.msra.mxu0 0.0
  %930 = vmatprep.subr.mxu0 0.0
  %931 = vmatpush1.msra.mxu0 0.0
  %932 = vmatprep.subr.mxu0 0.0
  %933 = vmatpush1.msra.mxu0 0.0
  %934 = vmatprep.mubr.f32.mxu0 0.0
  %935 = vmatmul.mubr.f32.gmra.mrb[0].mxu0 %v850
  %v936 = vpop.f32.mrb[0].mxu0
  %v937 = vadd.f32 %v847, %v936
  %v938 = vpop.f32.mrb[0].mxu0
  %939 = vmatprep.mubr.f32.mxu0 0.0
  %940 = vmatmul.mubr.f32.gmra.mrb[0].mxu0 %v853
  %v941 = vpop.f32.mrb[0].mxu0
  %v942 = vadd.f32 %v847, %v941
  %v943 = vpop.f32.mrb[0].mxu0
  %944 = vmatprep.mubr.f32.mxu0 0.0
  %945 = vmatmul.mubr.f32.gmra.mrb[0].mxu0 %v856
  %v946 = vpop.f32.mrb[0].mxu0
  %v947 = vadd.f32 %v847, %v946
  %v948 = vpop.f32.mrb[0].mxu0
  %949 = vmatprep.mubr.f32.mxu0 0.0
  %950 = vmatmul.mubr.f32.gmra.mrb[0].mxu0 %v859
  %v951 = vpop.f32.mrb[0].mxu0
  %v952 = vadd.f32 %v847, %v951
  %v953 = vpop.f32.mrb[0].mxu0
  %954 = vmatprep.mubr.f32.mxu0 0.0
  %955 = vmatmul.mubr.f32.gmra.mrb[0].mxu0 %v862
  %v956 = vpop.f32.mrb[0].mxu0
  %v957 = vadd.f32 %v847, %v956
  %v958 = vpop.f32.mrb[0].mxu0
  %959 = vmatprep.mubr.f32.mxu0 0.0
  %960 = vmatmul.mubr.f32.gmra.mrb[0].mxu0 %v865
  %v961 = vpop.f32.mrb[0].mxu0
  %v962 = vadd.f32 %v847, %v961
  %v963 = vpop.f32.mrb[0].mxu0
  %964 = vmatprep.mubr.f32.mxu0 0.0
  %965 = vmatmul.mubr.f32.gmra.mrb[0].mxu0 %v868
  %v966 = vpop.f32.mrb[0].mxu0
  %v967 = vadd.f32 %v847, %v966
  %v968 = vpop.f32.mrb[0].mxu0
  %969 = vdwg.mxu0
  %v971 = vsel %vm73, %v810, 0
  %v974 = vsel %vm73, %v815, 0
  %v977 = vsel %vm73, %v820, 0
  %v980 = vsel %vm73, %v825, 0
  %v983 = vsel %vm73, %v830, 0
  %v986 = vsel %vm73, %v835, 0
  %v989 = vsel %vm73, %v840, 0
  %v992 = vsel %vm73, %v937, 0
  %v995 = vsel %vm73, %v942, 0
  %v998 = vsel %vm73, %v947, 0
  %v1001 = vsel %vm73, %v952, 0
  %v1004 = vsel %vm73, %v957, 0
  %v1007 = vsel %vm73, %v962, 0
  %v1010 = vsel %vm73, %v967, 0
  %1012 = vmatprep.subr.mxu0 0.0
  %1013 = vmatpush1.xpose.msra.mxu0 %v992
  %1014 = vmatprep.subr.mxu0 0.0
  %1015 = vmatpush1.xpose.msra.mxu0 %v995
  %1016 = vmatprep.subr.mxu0 0.0
  %1017 = vmatpush1.xpose.msra.mxu0 %v998
  %1018 = vmatprep.subr.mxu0 0.0
  %1019 = vmatpush1.xpose.msra.mxu0 %v1001
  %1020 = vmatprep.subr.mxu0 0.0
  %1021 = vmatpush1.xpose.msra.mxu0 %v1004
  %1022 = vmatprep.subr.mxu0 0.0
  %1023 = vmatpush1.xpose.msra.mxu0 %v1007
  %1024 = vmatprep.subr.mxu0 0.0
  %1025 = vmatpush1.xpose.msra.mxu0 %v1010
  %1026 = vmatprep.subr.mxu0 0.0
  %1027 = vmatpush1.xpose.msra.mxu0 0.0
  %1028 = vmatprep.subr.mxu0 0.0
  %1029 = vmatpush1.xpose.msra.mxu0 0.0
  %1030 = vmatprep.subr.mxu0 0.0
  %1031 = vmatpush1.xpose.msra.mxu0 0.0
  %1032 = vmatprep.subr.mxu0 0.0
  %1033 = vmatpush1.xpose.msra.mxu0 0.0
  %1034 = vmatprep.subr.mxu0 0.0
  %1035 = vmatpush1.xpose.msra.mxu0 0.0
  %1036 = vmatprep.subr.mxu0 0.0
  %1037 = vmatpush1.xpose.msra.mxu0 0.0
  %1038 = vmatprep.subr.mxu0 0.0
  %1039 = vmatpush1.xpose.msra.mxu0 0.0
  %1040 = vmatprep.subr.mxu0 0.0
  %1041 = vmatpush1.xpose.msra.mxu0 0.0
  %1042 = vmatprep.subr.mxu0 0.0
  %1043 = vmatpush1.xpose.msra.mxu0 0.0
  %1044 = vmatprep.subr.mxu0 0.0
  %1045 = vmatpush1.xpose.msra.mxu0 0.0
  %1046 = vmatprep.subr.mxu0 0.0
  %1047 = vmatpush1.xpose.msra.mxu0 0.0
  %1048 = vmatprep.subr.mxu0 0.0
  %1049 = vmatpush1.xpose.msra.mxu0 0.0
  %1050 = vmatprep.subr.mxu0 0.0
  %1051 = vmatpush1.xpose.msra.mxu0 0.0
  %1052 = vmatprep.subr.mxu0 0.0
  %1053 = vmatpush1.xpose.msra.mxu0 0.0
  %1054 = vmatprep.subr.mxu0 0.0
  %1055 = vmatpush1.xpose.msra.mxu0 0.0
  %1056 = vmatprep.subr.mxu0 0.0
  %1057 = vmatpush1.xpose.msra.mxu0 0.0
  %1058 = vmatprep.subr.mxu0 0.0
  %1059 = vmatpush1.xpose.msra.mxu0 0.0
  %1060 = vmatprep.subr.mxu0 0.0
  %1061 = vmatpush1.xpose.msra.mxu0 0.0
  %1062 = vmatprep.subr.mxu0 0.0
  %1063 = vmatpush1.xpose.msra.mxu0 0.0
  %1064 = vmatprep.subr.mxu0 0.0
  %1065 = vmatpush1.xpose.msra.mxu0 0.0
  %1066 = vmatprep.subr.mxu0 0.0
  %1067 = vmatpush1.xpose.msra.mxu0 0.0
  %1068 = vmatprep.subr.mxu0 0.0
  %1069 = vmatpush1.xpose.msra.mxu0 0.0
  %1070 = vmatprep.subr.mxu0 0.0
  %1071 = vmatpush1.xpose.msra.mxu0 0.0
  %1072 = vmatprep.subr.mxu0 0.0
  %1073 = vmatpush1.xpose.msra.mxu0 0.0
  %1074 = vmatprep.subr.mxu0 0.0
  %1075 = vmatpush1.xpose.msra.mxu0 0.0
  %1076 = vmatprep.mubr.f32.mxu0 0.0
  %1077 = vmatmul.mubr.f32.gmra.mrb[0].mxu0 %v971
  %v1078 = vpop.f32.mrb[0].mxu0
  %v1079 = vadd.f32 0.0, %v1078
  %v1080 = vpop.f32.mrb[0].mxu0
  %1081 = vmatprep.mubr.f32.mxu0 0.0
  %1082 = vmatmul.mubr.f32.gmra.mrb[0].mxu0 %v974
  %v1083 = vpop.f32.mrb[0].mxu0
  %v1084 = vadd.f32 0.0, %v1083
  %v1085 = vpop.f32.mrb[0].mxu0
  %1086 = vmatprep.mubr.f32.mxu0 0.0
  %1087 = vmatmul.mubr.f32.gmra.mrb[0].mxu0 %v977
  %v1088 = vpop.f32.mrb[0].mxu0
  %v1089 = vadd.f32 0.0, %v1088
  %v1090 = vpop.f32.mrb[0].mxu0
  %1091 = vmatprep.mubr.f32.mxu0 0.0
  %1092 = vmatmul.mubr.f32.gmra.mrb[0].mxu0 %v980
  %v1093 = vpop.f32.mrb[0].mxu0
  %v1094 = vadd.f32 0.0, %v1093
  %v1095 = vpop.f32.mrb[0].mxu0
  %1096 = vmatprep.mubr.f32.mxu0 0.0
  %1097 = vmatmul.mubr.f32.gmra.mrb[0].mxu0 %v983
  %v1098 = vpop.f32.mrb[0].mxu0
  %v1099 = vadd.f32 0.0, %v1098
  %v1100 = vpop.f32.mrb[0].mxu0
  %1101 = vmatprep.mubr.f32.mxu0 0.0
  %1102 = vmatmul.mubr.f32.gmra.mrb[0].mxu0 %v986
  %v1103 = vpop.f32.mrb[0].mxu0
  %v1104 = vadd.f32 0.0, %v1103
  %v1105 = vpop.f32.mrb[0].mxu0
  %1106 = vmatprep.mubr.f32.mxu0 0.0
  %1107 = vmatmul.mubr.f32.gmra.mrb[0].mxu0 %v989
  %v1108 = vpop.f32.mrb[0].mxu0
  %v1109 = vadd.f32 0.0, %v1108
  %v1110 = vpop.f32.mrb[0].mxu0
  %1111 = vdwg.mxu0
  %v1112 = vsel %vm464, %v1079, -inf
  %1113 = vmax.xlane.f32.xlu0 %v1112
  %v1114 = vpop.xlane.xlu0 %1113
  %v1115 = vsel %vm464, %v1084, -inf
  %1116 = vmax.xlane.f32.xlu0 %v1115
  %v1117 = vpop.xlane.xlu0 %1116
  %v1118 = vsel %vm464, %v1089, -inf
  %1119 = vmax.xlane.f32.xlu0 %v1118
  %v1120 = vpop.xlane.xlu0 %1119
  %v1121 = vsel %vm464, %v1094, -inf
  %1122 = vmax.xlane.f32.xlu0 %v1121
  %v1123 = vpop.xlane.xlu0 %1122
  %v1124 = vsel %vm464, %v1099, -inf
  %1125 = vmax.xlane.f32.xlu0 %v1124
  %v1126 = vpop.xlane.xlu0 %1125
  %v1127 = vsel %vm464, %v1104, -inf
  %1128 = vmax.xlane.f32.xlu0 %v1127
  %v1129 = vpop.xlane.xlu0 %1128
  %v1130 = vsel %vm483, %v1109, -inf
  %1131 = vmax.xlane.f32.xlu0 %v1130
  %v1132 = vpop.xlane.xlu0 %1131
  %v1133 = vsub.f32 %v1079, %v1114
  %v1134 = vsub.f32 %v1084, %v1117
  %v1135 = vsub.f32 %v1089, %v1120
  %v1136 = vsub.f32 %v1094, %v1123
  %v1137 = vsub.f32 %v1099, %v1126
  %v1138 = vsub.f32 %v1104, %v1129
  %v1139 = vsub.f32 %v1109, %v1132
  %v1140 = vmul.f32 %v1133, 1.442695
  %v1141 = vpow.pop %v1140
  %v1142 = vmul.f32 %v1134, 1.442695
  %v1143 = vpow.pop %v1142
  %v1144 = vmul.f32 %v1135, 1.442695
  %v1145 = vpow.pop %v1144
  %v1146 = vmul.f32 %v1136, 1.442695
  %v1147 = vpow.pop %v1146
  %v1148 = vmul.f32 %v1137, 1.442695
  %v1149 = vpow.pop %v1148
  %v1150 = vmul.f32 %v1138, 1.442695
  %v1151 = vpow.pop %v1150
  %v1152 = vmul.f32 %v1139, 1.442695
  %v1153 = vpow.pop %v1152
  %v1154 = vsel %vm464, %v1141, 0.0
  %1155 = vadd.xlane.f32.xlu0 %v1154
  %v1156 = vpop.xlane.xlu0 %1155
  %v1157 = vsel %vm464, %v1143, 0.0
  %1158 = vadd.xlane.f32.xlu0 %v1157
  %v1159 = vpop.xlane.xlu0 %1158
  %v1160 = vsel %vm464, %v1145, 0.0
  %1161 = vadd.xlane.f32.xlu0 %v1160
  %v1162 = vpop.xlane.xlu0 %1161
  %v1163 = vsel %vm464, %v1147, 0.0
  %1164 = vadd.xlane.f32.xlu0 %v1163
  %v1165 = vpop.xlane.xlu0 %1164
  %v1166 = vsel %vm464, %v1149, 0.0
  %1167 = vadd.xlane.f32.xlu0 %v1166
  %v1168 = vpop.xlane.xlu0 %1167
  %v1169 = vsel %vm464, %v1151, 0.0
  %1170 = vadd.xlane.f32.xlu0 %v1169
  %v1171 = vpop.xlane.xlu0 %1170
  %v1172 = vsel %vm483, %v1153, 0.0
  %1173 = vadd.xlane.f32.xlu0 %v1172
  %v1174 = vpop.xlane.xlu0 %1173
  %v1175 = vrcp.pop %v1156
  %v1176 = vrcp.pop %v1159
  %v1177 = vrcp.pop %v1162
  %v1178 = vrcp.pop %v1165
  %v1179 = vrcp.pop %v1168
  %v1180 = vrcp.pop %v1171
  %v1181 = vrcp.pop %v1174
  %v1182 = vmul.f32 %v1141, %v1175
  %v1183 = vmul.f32 %v1143, %v1176
  %v1184 = vmul.f32 %v1145, %v1177
  %v1185 = vmul.f32 %v1147, %v1178
  %v1186 = vmul.f32 %v1149, %v1179
  %v1187 = vmul.f32 %v1151, %v1180
  %v1188 = vmul.f32 %v1153, %v1181
  %v1190 = vsel %vm464, %v1182, 0
  %v1193 = vsel %vm464, %v1183, 0
  %v1196 = vsel %vm464, %v1184, 0
  %v1199 = vsel %vm464, %v1185, 0
  %v1202 = vsel %vm464, %v1186, 0
  %v1205 = vsel %vm464, %v1187, 0
  %v1208 = vsel %vm464, %v1188, 0
  %1210 = vmatprep.subr.mxu0 0.0
  %1211 = vmatpush1.msra.mxu0 %v43
  %1212 = vmatprep.subr.mxu0 0.0
  %1213 = vmatpush1.msra.mxu0 %v44
  %1214 = vmatprep.subr.mxu0 0.0
  %1215 = vmatpush1.msra.mxu0 %v45
  %1216 = vmatprep.subr.mxu0 0.0
  %1217 = vmatpush1.msra.mxu0 %v46
  %1218 = vmatprep.subr.mxu0 0.0
  %1219 = vmatpush1.msra.mxu0 %v47
  %1220 = vmatprep.subr.mxu0 0.0
  %1221 = vmatpush1.msra.mxu0 %v48
  %1222 = vmatprep.subr.mxu0 0.0
  %1223 = vmatpush1.msra.mxu0 %v572
  %1224 = vmatprep.subr.mxu0 0.0
  %1225 = vmatpush1.msra.mxu0 0.0
  %1226 = vmatprep.subr.mxu0 0.0
  %1227 = vmatpush1.msra.mxu0 0.0
  %1228 = vmatprep.subr.mxu0 0.0
  %1229 = vmatpush1.msra.mxu0 0.0
  %1230 = vmatprep.subr.mxu0 0.0
  %1231 = vmatpush1.msra.mxu0 0.0
  %1232 = vmatprep.subr.mxu0 0.0
  %1233 = vmatpush1.msra.mxu0 0.0
  %1234 = vmatprep.subr.mxu0 0.0
  %1235 = vmatpush1.msra.mxu0 0.0
  %1236 = vmatprep.subr.mxu0 0.0
  %1237 = vmatpush1.msra.mxu0 0.0
  %1238 = vmatprep.subr.mxu0 0.0
  %1239 = vmatpush1.msra.mxu0 0.0
  %1240 = vmatprep.subr.mxu0 0.0
  %1241 = vmatpush1.msra.mxu0 0.0
  %1242 = vmatprep.subr.mxu0 0.0
  %1243 = vmatpush1.msra.mxu0 0.0
  %1244 = vmatprep.subr.mxu0 0.0
  %1245 = vmatpush1.msra.mxu0 0.0
  %1246 = vmatprep.subr.mxu0 0.0
  %1247 = vmatpush1.msra.mxu0 0.0
  %1248 = vmatprep.subr.mxu0 0.0
  %1249 = vmatpush1.msra.mxu0 0.0
  %1250 = vmatprep.subr.mxu0 0.0
  %1251 = vmatpush1.msra.mxu0 0.0
  %1252 = vmatprep.subr.mxu0 0.0
  %1253 = vmatpush1.msra.mxu0 0.0
  %1254 = vmatprep.subr.mxu0 0.0
  %1255 = vmatpush1.msra.mxu0 0.0
  %1256 = vmatprep.subr.mxu0 0.0
  %1257 = vmatpush1.msra.mxu0 0.0
  %1258 = vmatprep.subr.mxu0 0.0
  %1259 = vmatpush1.msra.mxu0 0.0
  %1260 = vmatprep.subr.mxu0 0.0
  %1261 = vmatpush1.msra.mxu0 0.0
  %1262 = vmatprep.subr.mxu0 0.0
  %1263 = vmatpush1.msra.mxu0 0.0
  %1264 = vmatprep.subr.mxu0 0.0
  %1265 = vmatpush1.msra.mxu0 0.0
  %1266 = vmatprep.subr.mxu0 0.0
  %1267 = vmatpush1.msra.mxu0 0.0
  %1268 = vmatprep.subr.mxu0 0.0
  %1269 = vmatpush1.msra.mxu0 0.0
  %1270 = vmatprep.subr.mxu0 0.0
  %1271 = vmatpush1.msra.mxu0 0.0
  %1272 = vmatprep.subr.mxu0 0.0
  %1273 = vmatpush1.msra.mxu0 0.0
  %1274 = vmatprep.mubr.f32.mxu0 0.0
  %1275 = vmatmul.mubr.f32.gmra.mrb[0].mxu0 %v1190
  %v1276 = vpop.f32.mrb[0].mxu0
  %v1277 = vadd.f32 %v547, %v1276
  %v1278 = vpop.f32.mrb[0].mxu0
  %1279 = vmatprep.mubr.f32.mxu0 0.0
  %1280 = vmatmul.mubr.f32.gmra.mrb[0].mxu0 %v1193
  %v1281 = vpop.f32.mrb[0].mxu0
  %v1282 = vadd.f32 %v547, %v1281
  %v1283 = vpop.f32.mrb[0].mxu0
  %1284 = vmatprep.mubr.f32.mxu0 0.0
  %1285 = vmatmul.mubr.f32.gmra.mrb[0].mxu0 %v1196
  %v1286 = vpop.f32.mrb[0].mxu0
  %v1287 = vadd.f32 %v547, %v1286
  %v1288 = vpop.f32.mrb[0].mxu0
  %1289 = vmatprep.mubr.f32.mxu0 0.0
  %1290 = vmatmul.mubr.f32.gmra.mrb[0].mxu0 %v1199
  %v1291 = vpop.f32.mrb[0].mxu0
  %v1292 = vadd.f32 %v547, %v1291
  %v1293 = vpop.f32.mrb[0].mxu0
  %1294 = vmatprep.mubr.f32.mxu0 0.0
  %1295 = vmatmul.mubr.f32.gmra.mrb[0].mxu0 %v1202
  %v1296 = vpop.f32.mrb[0].mxu0
  %v1297 = vadd.f32 %v547, %v1296
  %v1298 = vpop.f32.mrb[0].mxu0
  %1299 = vmatprep.mubr.f32.mxu0 0.0
  %1300 = vmatmul.mubr.f32.gmra.mrb[0].mxu0 %v1205
  %v1301 = vpop.f32.mrb[0].mxu0
  %v1302 = vadd.f32 %v547, %v1301
  %v1303 = vpop.f32.mrb[0].mxu0
  %1304 = vmatprep.mubr.f32.mxu0 0.0
  %1305 = vmatmul.mubr.f32.gmra.mrb[0].mxu0 %v1208
  %v1306 = vpop.f32.mrb[0].mxu0
  %v1307 = vadd.f32 %v547, %v1306
  %v1308 = vpop.f32.mrb[0].mxu0
  %1309 = vdwg.mxu0
  %s1310 = scalar_lea.vmem %s9, 56
  %1311 = vst [vmem:[%s1310] sm:$0xff] %v1277
  %1312 = vst [vmem:[%s1310 + $0x8] sm:$0xff] %v1282
  %1313 = vst [vmem:[%s1310 + $0x10] sm:$0xff] %v1287
  %1314 = vst [vmem:[%s1310 + $0x18] sm:$0xff] %v1292
  %1315 = vst [vmem:[%s1310 + $0x20] sm:$0xff] %v1297
  %1316 = vst [vmem:[%s1310 + $0x28] sm:$0xff] %v1302
  %1317 = vst [vmem:[%s1310 + $0x30] sm:$0x3] %v1307
  // Predicated region
  $region38: #{tpu_custom_call.1} parent=0 // pred_check
    _
  $region39: #{tpu_custom_call.1} parent=0 // pred_check_branch
    %1319 = sbr.rel (0) target = $region41
  $region40: #{tpu_custom_call.1} parent=0 // pred_region
    _
  $region41: #{tpu_custom_call.1} parent=0 // pred_fallthru
    _
  // Predicated region
  $region42: #{tpu_custom_call.1} parent=0 // pred_check
    _
  $region43: #{tpu_custom_call.1} parent=0 // pred_check_branch
    %1321 = sbr.rel (0) target = $region45
  $region44: #{tpu_custom_call.1} parent=0 // pred_region
    _
  $region45: #{tpu_custom_call.1} parent=0 // pred_fallthru
    _

</llo_original>
